<compile_context>
chip_gen: v6e
topology: v6e:2x2x1
jax: 0.10.0
libtpu: 0.0.40
codegen_flags: <defaults>
</compile_context>

<pallas_src>
import jax
import jax.numpy as jnp
from jax.experimental import pallas as pl
from jax.experimental.pallas import tpu as pltpu


# ---------------------------- Pallas kernel ---------------------------------
def _classifier_kernel(x_ref,
                       w1_ref, b1_ref,
                       w2_ref, b2_ref,
                       w3_ref, b3_ref,
                       w4_ref, b4_ref,
                       o_ref):
    """Fused 4-layer MLP: (Linear+ReLU) -> Linear -> (Linear+ReLU) -> Linear.

    Activations/weights are bf16 on the MXU; accumulation, bias add and ReLU
    are f32. Dropout layers are identity (eval mode).
    """
    x = x_ref[...]                                                   # bf16

    h = jnp.dot(x, w1_ref[...], preferred_element_type=jnp.float32) + b1_ref[...]
    h = jnp.maximum(h, 0.0).astype(jnp.bfloat16)

    h = jnp.dot(h, w2_ref[...], preferred_element_type=jnp.float32) + b2_ref[...]
    # TODO(synk): nn.Dropout training-mode masking (prng_seed/prng_random_bits
    # + 1/(1-p) scale) not implemented; identity matches eval().
    h = h.astype(jnp.bfloat16)

    h = jnp.dot(h, w3_ref[...], preferred_element_type=jnp.float32) + b3_ref[...]
    h = jnp.maximum(h, 0.0).astype(jnp.bfloat16)
    # Second Dropout = identity (eval mode).

    o_ref[...] = (jnp.dot(h, w4_ref[...], preferred_element_type=jnp.float32)
                  + b4_ref[...])


# ------------------------------ wrapper --------------------------------------
def _round_up(a, m):
    return ((a + m - 1) // m) * m


def classifier_forward(x, params, *, tile_b=128):
    """x: [B, inDim] float32 -> logits [B, vocab] float32."""
    B, in_dim = x.shape
    vocab = params["w4"].shape[1]

    # bf16 packs 16 rows per vreg -> batch tiles are multiples of 16.
    eff_tile = _round_up(min(tile_b, _round_up(B, 16)), 16)
    Bp = _round_up(B, eff_tile)
    # v7x has 2 TensorCores: prefer >= 2 parallel grid steps when batch allows.
    if Bp // eff_tile == 1 and B > 16 and eff_tile >= 32:
        eff_tile //= 2
        Bp = _round_up(B, eff_tile)
    grid = (Bp // eff_tile,)

    # Pad the ragged batch tail (garbage rows are sliced off at the end).
    # TODO(synk): could instead mask the final store in-kernel to skip the pad
    # copies; negligible at these sizes.
    if Bp != B:
        x = jnp.pad(x, ((0, Bp - B), (0, 0)))
    x_bf16 = x.astype(jnp.bfloat16)

    # Weights cast to bf16 once, outside the kernel; biases stay f32.
    weight_args = (
        params["w1"].astype(jnp.bfloat16), params["b1"],
        params["w2"].astype(jnp.bfloat16), params["b2"],
        params["w3"].astype(jnp.bfloat16), params["b3"],
        params["w4"].astype(jnp.bfloat16), params["b4"],
    )

    def resident_spec(arr):
        # Same block every grid step -> stays VMEM-resident across the batch.
        return pl.BlockSpec(arr.shape, lambda i: (0,) * arr.ndim)

    # ---- cost estimate (lets XLA overlap surrounding ops) -------------------
    d1, d2, d3 = 2 * in_dim, 4 * in_dim, 8 * in_dim
    flops = 2 * Bp * (in_dim * d1 + d1 * d2 + d2 * d3 + d3 * vocab)
    weight_bytes = sum(int(w.size) * w.dtype.itemsize for w in weight_args)
    bytes_accessed = int(x_bf16.size) * 2 + weight_bytes + Bp * vocab * 4
    cost = pl.CostEstimate(flops=flops, transcendentals=0,
                           bytes_accessed=bytes_accessed)

    # ---- explicit VMEM budget (v7x has only 64 MiB physical) ----------------
    x_tile_bytes = eff_tile * in_dim * 2
    out_tile_bytes = eff_tile * vocab * 4
    vmem_needed = 2 * weight_bytes + 2 * (x_tile_bytes + out_tile_bytes)
    vmem_limit = min(64 * 1024 * 1024,
                     max(vmem_needed + (8 << 20), 16 * 1024 * 1024))

    out = pl.pallas_call(
        _classifier_kernel,
        out_shape=jax.ShapeDtypeStruct((Bp, vocab), jnp.float32),
        grid_spec=pltpu.PrefetchScalarGridSpec(
            num_scalar_prefetch=0,
            grid=grid,
            in_specs=[pl.BlockSpec((eff_tile, in_dim), lambda i: (i, 0))]
                     + [resident_spec(w) for w in weight_args],
            out_specs=pl.BlockSpec((eff_tile, vocab), lambda i: (i, 0)),
        ),
        compiler_params=pltpu.CompilerParams(
            dimension_semantics=("parallel",),
            vmem_limit_bytes=vmem_limit),
        cost_estimate=cost,
    )(x_bf16, *weight_args)

    return out[:B]


# ------------------------ reference (pure JAX) --------------------------------
def classifier_reference(x, params):
    """Mirrors the kernel's mixed precision: bf16 MXU inputs, f32 accum/elementwise."""
    bf = jnp.bfloat16
    h = jnp.dot(x.astype(bf), params["w1"].astype(bf),
                preferred_element_type=jnp.float32) + params["b1"]
    h = jnp.maximum(h, 0.0)
    h = jnp.dot(h.astype(bf), params["w2"].astype(bf),
                preferred_element_type=jnp.float32) + params["b2"]
    h = jnp.dot(h.astype(bf), params["w3"].astype(bf),
                preferred_element_type=jnp.float32) + params["b3"]
    h = jnp.maximum(h, 0.0)
    return jnp.dot(h.astype(bf), params["w4"].astype(bf),
                   preferred_element_type=jnp.float32) + params["b4"]


# --------------------------- parameter creation -------------------------------
def _linear_params(key, fan_in, fan_out):
    # nn.Linear default init: U(-1/sqrt(fan_in), 1/sqrt(fan_in)) for W and b.
    k = 1.0 / jnp.sqrt(jnp.float32(fan_in))
    kw, kb = jax.random.split(key)
    w_t = jax.random.uniform(kw, (fan_in, fan_out), jnp.float32, -k, k)  # pre-transposed
    b = jax.random.uniform(kb, (1, fan_out), jnp.float32, -k, k)
    return w_t, b


def init_params(key, in_dim, vocab):
    k1, k2, k3, k4 = jax.random.split(key, 4)
    p = {}
    p["w1"], p["b1"] = _linear_params(k1, in_dim, 2 * in_dim)
    p["w2"], p["b2"] = _linear_params(k2, 2 * in_dim, 4 * in_dim)
    p["w3"], p["b3"] = _linear_params(k3, 4 * in_dim, 8 * in_dim)
    p["w4"], p["b4"] = _linear_params(k4, 8 * in_dim, vocab)
    return p


# --------------------------------- main ---------------------------------------
if __name__ == "__main__":
    IN_DIM = 64      # inDim
    VOCAB = 128      # vocab
    BATCH = 2

    root = jax.random.PRNGKey(0)
    kp, kx = jax.random.split(root)

    params = init_params(kp, IN_DIM, VOCAB)
    x = jax.random.normal(kx, (BATCH, IN_DIM), jnp.float32)

    out = classifier_forward(x, params)
    out = jax.block_until_ready(out)

    ref = classifier_reference(x, params)

    assert out.shape == (BATCH, VOCAB), out.shape
    assert bool(jnp.all(jnp.isfinite(out)))
    assert bool(jnp.allclose(out, ref, atol=2e-2, rtol=2e-2)), float(
        jnp.max(jnp.abs(out - ref)))
    print("KERNEL_OK")
</pallas_src>

<mosaic_0001>
module attributes {stable_mosaic.version = 11 : i64} {
  func.func @_classifier_kernel(%arg0: i32, %arg1: memref<16x64xbf16, #tpu.memory_space<vmem>>, %arg2: memref<64x128xbf16, #tpu.memory_space<vmem>>, %arg3: memref<1x128xf32, #tpu.memory_space<vmem>>, %arg4: memref<128x256xbf16, #tpu.memory_space<vmem>>, %arg5: memref<1x256xf32, #tpu.memory_space<vmem>>, %arg6: memref<256x512xbf16, #tpu.memory_space<vmem>>, %arg7: memref<1x512xf32, #tpu.memory_space<vmem>>, %arg8: memref<512x128xbf16, #tpu.memory_space<vmem>>, %arg9: memref<1x128xf32, #tpu.memory_space<vmem>>, %arg10: memref<16x128xf32, #tpu.memory_space<vmem>>) attributes {dimension_semantics = [#tpu.dimension_semantics<parallel>], iteration_bounds = array<i64: 1>, scalar_prefetch = 0 : i64, scratch_operands = 0 : i64, tpu.core_type = #tpu.core_type<tc>, window_params = [{transform_indices = @transform_0, window_bounds = array<i64: 16, 64>}, {pipeline_mode = #tpu.pipeline_mode<synchronous>, transform_indices = @transform_1, window_bounds = array<i64: 64, 128>}, {pipeline_mode = #tpu.pipeline_mode<synchronous>, transform_indices = @transform_2, window_bounds = array<i64: 1, 128>}, {pipeline_mode = #tpu.pipeline_mode<synchronous>, transform_indices = @transform_3, window_bounds = array<i64: 128, 256>}, {pipeline_mode = #tpu.pipeline_mode<synchronous>, transform_indices = @transform_4, window_bounds = array<i64: 1, 256>}, {pipeline_mode = #tpu.pipeline_mode<synchronous>, transform_indices = @transform_5, window_bounds = array<i64: 256, 512>}, {pipeline_mode = #tpu.pipeline_mode<synchronous>, transform_indices = @transform_6, window_bounds = array<i64: 1, 512>}, {pipeline_mode = #tpu.pipeline_mode<synchronous>, transform_indices = @transform_7, window_bounds = array<i64: 512, 128>}, {pipeline_mode = #tpu.pipeline_mode<synchronous>, transform_indices = @transform_8, window_bounds = array<i64: 1, 128>}, {transform_indices = @transform_9, window_bounds = array<i64: 16, 128>}]} {
    %c0 = arith.constant 0 : index
    %c0_0 = arith.constant 0 : index
    %0 = vector.load %arg1[%c0, %c0_0] : memref<16x64xbf16, #tpu.memory_space<vmem>>, vector<16x64xbf16>
    %c0_1 = arith.constant 0 : index
    %c0_2 = arith.constant 0 : index
    %1 = vector.load %arg2[%c0_1, %c0_2] : memref<64x128xbf16, #tpu.memory_space<vmem>>, vector<64x128xbf16>
    %cst = arith.constant dense<0.000000e+00> : vector<16x128xf32>
    %2 = tpu.matmul %0, %1, %cst {dimension_numbers = #tpu.dot_dimension_numbers<[1], [0], [0], [1], [0, 0, 1, 1], [], []>} : vector<16x64xbf16>, vector<64x128xbf16>, vector<16x128xf32> -> vector<16x128xf32>
    %c0_3 = arith.constant 0 : index
    %c0_4 = arith.constant 0 : index
    %3 = vector.load %arg3[%c0_3, %c0_4] : memref<1x128xf32, #tpu.memory_space<vmem>>, vector<1x128xf32>
    %4 = vector.broadcast %3 : vector<1x128xf32> to vector<16x128xf32>
    %5 = arith.addf %2, %4 : vector<16x128xf32>
    %cst_5 = arith.constant 0.000000e+00 : f32
    %6 = vector.broadcast %cst_5 : f32 to vector<16x128xf32>
    %7 = arith.maximumf %5, %6 : vector<16x128xf32>
    %8 = arith.truncf %7 : vector<16x128xf32> to vector<16x128xbf16>
    %c0_6 = arith.constant 0 : index
    %c0_7 = arith.constant 0 : index
    %9 = vector.load %arg4[%c0_6, %c0_7] : memref<128x256xbf16, #tpu.memory_space<vmem>>, vector<128x256xbf16>
    %cst_8 = arith.constant dense<0.000000e+00> : vector<16x256xf32>
    %10 = tpu.matmul %8, %9, %cst_8 {dimension_numbers = #tpu.dot_dimension_numbers<[1], [0], [0], [1], [0, 0, 1, 1], [], []>} : vector<16x128xbf16>, vector<128x256xbf16>, vector<16x256xf32> -> vector<16x256xf32>
    %c0_9 = arith.constant 0 : index
    %c0_10 = arith.constant 0 : index
    %11 = vector.load %arg5[%c0_9, %c0_10] : memref<1x256xf32, #tpu.memory_space<vmem>>, vector<1x256xf32>
    %12 = vector.broadcast %11 : vector<1x256xf32> to vector<16x256xf32>
    %13 = arith.addf %10, %12 : vector<16x256xf32>
    %14 = arith.truncf %13 : vector<16x256xf32> to vector<16x256xbf16>
    %c0_11 = arith.constant 0 : index
    %c0_12 = arith.constant 0 : index
    %15 = vector.load %arg6[%c0_11, %c0_12] : memref<256x512xbf16, #tpu.memory_space<vmem>>, vector<256x512xbf16>
    %cst_13 = arith.constant dense<0.000000e+00> : vector<16x512xf32>
    %16 = tpu.matmul %14, %15, %cst_13 {dimension_numbers = #tpu.dot_dimension_numbers<[1], [0], [0], [1], [0, 0, 1, 1], [], []>} : vector<16x256xbf16>, vector<256x512xbf16>, vector<16x512xf32> -> vector<16x512xf32>
    %c0_14 = arith.constant 0 : index
    %c0_15 = arith.constant 0 : index
    %17 = vector.load %arg7[%c0_14, %c0_15] : memref<1x512xf32, #tpu.memory_space<vmem>>, vector<1x512xf32>
    %18 = vector.broadcast %17 : vector<1x512xf32> to vector<16x512xf32>
    %19 = arith.addf %16, %18 : vector<16x512xf32>
    %cst_16 = arith.constant 0.000000e+00 : f32
    %20 = vector.broadcast %cst_16 : f32 to vector<16x512xf32>
    %21 = arith.maximumf %19, %20 : vector<16x512xf32>
    %22 = arith.truncf %21 : vector<16x512xf32> to vector<16x512xbf16>
    %c0_17 = arith.constant 0 : index
    %c0_18 = arith.constant 0 : index
    %23 = vector.load %arg8[%c0_17, %c0_18] : memref<512x128xbf16, #tpu.memory_space<vmem>>, vector<512x128xbf16>
    %cst_19 = arith.constant dense<0.000000e+00> : vector<16x128xf32>
    %24 = tpu.matmul %22, %23, %cst_19 {dimension_numbers = #tpu.dot_dimension_numbers<[1], [0], [0], [1], [0, 0, 1, 1], [], []>} : vector<16x512xbf16>, vector<512x128xbf16>, vector<16x128xf32> -> vector<16x128xf32>
    %c0_20 = arith.constant 0 : index
    %c0_21 = arith.constant 0 : index
    %25 = vector.load %arg9[%c0_20, %c0_21] : memref<1x128xf32, #tpu.memory_space<vmem>>, vector<1x128xf32>
    %26 = vector.broadcast %25 : vector<1x128xf32> to vector<16x128xf32>
    %27 = arith.addf %24, %26 : vector<16x128xf32>
    %c0_22 = arith.constant 0 : index
    %c0_23 = arith.constant 0 : index
    %28 = vector.load %arg10[%c0_22, %c0_23] : memref<16x128xf32, #tpu.memory_space<vmem>>, vector<16x128xf32>
    tpu.vector_store %arg10[%c0_22, %c0_23], %27 {strides = array<i32>} : memref<16x128xf32, #tpu.memory_space<vmem>>, vector<16x128xf32>,
    return
  }
  func.func @transform_0(%arg0: i32) -> (i32, i32) {
    %c0_i32 = arith.constant 0 : i32
    %c0_i32_0 = arith.constant 0 : i32
    return %arg0, %c0_i32 : i32, i32
  }
  func.func @transform_1(%arg0: i32) -> (i32, i32) {
    %c0_i32 = arith.constant 0 : i32
    %c0_i32_0 = arith.constant 0 : i32
    %c0_i32_1 = arith.constant 0 : i32
    return %c0_i32, %c0_i32_0 : i32, i32
  }
  func.func @transform_2(%arg0: i32) -> (i32, i32) {
    %c0_i32 = arith.constant 0 : i32
    %c0_i32_0 = arith.constant 0 : i32
    %c0_i32_1 = arith.constant 0 : i32
    return %c0_i32, %c0_i32_0 : i32, i32
  }
  func.func @transform_3(%arg0: i32) -> (i32, i32) {
    %c0_i32 = arith.constant 0 : i32
    %c0_i32_0 = arith.constant 0 : i32
    %c0_i32_1 = arith.constant 0 : i32
    return %c0_i32, %c0_i32_0 : i32, i32
  }
  func.func @transform_4(%arg0: i32) -> (i32, i32) {
    %c0_i32 = arith.constant 0 : i32
    %c0_i32_0 = arith.constant 0 : i32
    %c0_i32_1 = arith.constant 0 : i32
    return %c0_i32, %c0_i32_0 : i32, i32
  }
  func.func @transform_5(%arg0: i32) -> (i32, i32) {
    %c0_i32 = arith.constant 0 : i32
    %c0_i32_0 = arith.constant 0 : i32
    %c0_i32_1 = arith.constant 0 : i32
    return %c0_i32, %c0_i32_0 : i32, i32
  }
  func.func @transform_6(%arg0: i32) -> (i32, i32) {
    %c0_i32 = arith.constant 0 : i32
    %c0_i32_0 = arith.constant 0 : i32
    %c0_i32_1 = arith.constant 0 : i32
    return %c0_i32, %c0_i32_0 : i32, i32
  }
  func.func @transform_7(%arg0: i32) -> (i32, i32) {
    %c0_i32 = arith.constant 0 : i32
    %c0_i32_0 = arith.constant 0 : i32
    %c0_i32_1 = arith.constant 0 : i32
    return %c0_i32, %c0_i32_0 : i32, i32
  }
  func.func @transform_8(%arg0: i32) -> (i32, i32) {
    %c0_i32 = arith.constant 0 : i32
    %c0_i32_0 = arith.constant 0 : i32
    %c0_i32_1 = arith.constant 0 : i32
    return %c0_i32, %c0_i32_0 : i32, i32
  }
  func.func @transform_9(%arg0: i32) -> (i32, i32) {
    %c0_i32 = arith.constant 0 : i32
    %c0_i32_0 = arith.constant 0 : i32
    return %arg0, %c0_i32 : i32, i32
  }
}

</mosaic_0001>

<llo_original>
// kernel: tpu_custom_call.1
$region0: #{tpu_custom_call.1}
  #allocation0 [shape = 'u32[]', space=smem, size = 0x4, offset = 0x4, fixed_abs, tag = 'smem constant byte address 0x4 - core index']
  #allocation1 [shape = 'u32[144,128]{1,0:T(1,128)}', space=vmem, size = 0x12000, scoped, tag = 'internal scratch']
  %s0 = inlined_call_operand.hbm [shape: bf16[16,64], index: 0, kind: input, shape index: {}]
  %s1 = inlined_call_operand.hbm [shape: bf16[64,128], index: 1, kind: input, shape index: {}]
  %s2 = inlined_call_operand.vmem [shape: f32[1,128], index: 2, kind: input, shape index: {}]
  %s3 = inlined_call_operand.hbm [shape: bf16[128,256], index: 3, kind: input, shape index: {}]
  %s4 = inlined_call_operand.vmem [shape: f32[1,256], index: 4, kind: input, shape index: {}]
  %s5 = inlined_call_operand.hbm [shape: bf16[256,512], index: 5, kind: input, shape index: {}]
  %s6 = inlined_call_operand.vmem [shape: f32[1,512], index: 6, kind: input, shape index: {}]
  %s7 = inlined_call_operand.hbm [shape: bf16[512,128], index: 7, kind: input, shape index: {}]
  %s8 = inlined_call_operand.vmem [shape: f32[1,128], index: 8, kind: input, shape index: {}]
  %s9 = inlined_call_operand.hbm [shape: f32[16,128], index: 9, kind: output, shape index: {}]
  %s10 = sld [smem:[#allocation0]]
  $region66: #{tpu_custom_call.1} parent=0
    _
  %s12 = ssub.s32 1, %s10
  %s13 = scalar_select 0, %s12, %s10
  $region1: #{tpu_custom_call.1} parent=0
    #allocation2 [shape = 'u8[4096]{0}', space=vmem, size = 0x1000, scoped, tag = 'input window, operand 0, single buffered']
    #allocation3 [shape = 's32[1]{0}', space=sflag, size = 0x4, scoped, tag = 'scoped memory for tpu_custom_call.1']
    #allocation4 [shape = 's32[1]{0}', space=sflag, size = 0x4, scoped, tag = 'scoped memory for tpu_custom_call.1']
    #allocation5 [shape = 'u8[16384]{0}', space=vmem, size = 0x4000, scoped, tag = 'input window, operand 1, single buffered']
    #allocation6 [shape = 's32[1]{0}', space=sflag, size = 0x4, scoped, tag = 'scoped memory for tpu_custom_call.1']
    #allocation7 [shape = 'u8[65536]{0}', space=vmem, size = 0x10000, scoped, tag = 'input window, operand 3, single buffered']
    #allocation8 [shape = 'u8[262144]{0}', space=vmem, size = 0x40000, scoped, tag = 'input window, operand 5, single buffered']
    #allocation9 [shape = 's32[1]{0}', space=sflag, size = 0x4, scoped, tag = 'scoped memory for tpu_custom_call.1']
    #allocation10 [shape = 'u8[131072]{0}', space=vmem, size = 0x20000, scoped, tag = 'input window, operand 7, single buffered']
    #allocation11 [shape = 'u8[8192]{0}', space=vmem, size = 0x2000, scoped, tag = 'output window, operand 0, single buffered']
    %14 = vsyncpa [#allocation3], 0
    %15 = vsyncpa [#allocation6], 0
    %16 = vsyncpa [#allocation9], 0
    %17 = vsyncpa [#allocation4], 0
    // Predicated region
    $region2: #{tpu_custom_call.1} parent=1 // pred_check
      _
    $region3: #{tpu_custom_call.1} parent=1 // pred_check_branch
      %19 = sbr.rel (0) target = $region5
    $region4: #{tpu_custom_call.1} parent=1 // pred_region
      %s21 = ssub.s32 128, 128
      %22 = vsyncadd [#allocation3], %s21
      %s23 = sshll.u32 [#allocation2], 4
      %s24 = int_to_ptr.vmem [resolvable:$true] %s23
      %29 = dma.hbm_to_vmem [thread:$0]  %s0, 128, %s24, [#allocation3], 64, 64, 4
    $region5: #{tpu_custom_call.1} parent=1 // pred_fallthru
      _
    // Predicated region
    $region6: #{tpu_custom_call.1} parent=1 // pred_check
      _
    $region7: #{tpu_custom_call.1} parent=1 // pred_check_branch
      %31 = sbr.rel (0) target = $region9
    $region8: #{tpu_custom_call.1} parent=1 // pred_region
      %s33 = ssub.s32 512, 512
      %34 = vsyncadd [#allocation6], %s33
      %s35 = sshll.u32 [#allocation5], 4
      %s36 = int_to_ptr.vmem [resolvable:$true] %s35
      %41 = dma.hbm_to_vmem [thread:$0]  %s1, 512, %s36, [#allocation6], 64, 64, 4
    $region9: #{tpu_custom_call.1} parent=1 // pred_fallthru
      _
    // Predicated region
    $region10: #{tpu_custom_call.1} parent=1 // pred_check
      _
    $region11: #{tpu_custom_call.1} parent=1 // pred_check_branch
      %43 = sbr.rel (0) target = $region13
    $region12: #{tpu_custom_call.1} parent=1 // pred_region
      _
    $region13: #{tpu_custom_call.1} parent=1 // pred_fallthru
      _
    // Predicated region
    $region14: #{tpu_custom_call.1} parent=1 // pred_check
      _
    $region15: #{tpu_custom_call.1} parent=1 // pred_check_branch
      %45 = sbr.rel (0) target = $region17
    $region16: #{tpu_custom_call.1} parent=1 // pred_region
      %s47 = ssub.s32 2048, 2048
      %48 = vsyncadd [#allocation6], %s47
      %s49 = sshll.u32 [#allocation7], 4
      %s50 = int_to_ptr.vmem [resolvable:$true] %s49
      %55 = dma.hbm_to_vmem [thread:$0]  %s3, 2048, %s50, [#allocation6], 128, 128, 8
    $region17: #{tpu_custom_call.1} parent=1 // pred_fallthru
      _
    // Predicated region
    $region18: #{tpu_custom_call.1} parent=1 // pred_check
      _
    $region19: #{tpu_custom_call.1} parent=1 // pred_check_branch
      %57 = sbr.rel (0) target = $region21
    $region20: #{tpu_custom_call.1} parent=1 // pred_region
      _
    $region21: #{tpu_custom_call.1} parent=1 // pred_fallthru
      _
    // Predicated region
    $region22: #{tpu_custom_call.1} parent=1 // pred_check
      _
    $region23: #{tpu_custom_call.1} parent=1 // pred_check_branch
      %59 = sbr.rel (0) target = $region25
    $region24: #{tpu_custom_call.1} parent=1 // pred_region
      %s61 = ssub.s32 8192, 8192
      %62 = vsyncadd [#allocation9], %s61
      %s63 = sshll.u32 [#allocation8], 4
      %s64 = int_to_ptr.vmem [resolvable:$true] %s63
      %69 = dma.hbm_to_vmem [thread:$0]  %s5, 8192, %s64, [#allocation9], 256, 256, 16
    $region25: #{tpu_custom_call.1} parent=1 // pred_fallthru
      _
    // Predicated region
    $region26: #{tpu_custom_call.1} parent=1 // pred_check
      _
    $region27: #{tpu_custom_call.1} parent=1 // pred_check_branch
      %71 = sbr.rel (0) target = $region29
    $region28: #{tpu_custom_call.1} parent=1 // pred_region
      _
    $region29: #{tpu_custom_call.1} parent=1 // pred_fallthru
      _
    // Predicated region
    $region30: #{tpu_custom_call.1} parent=1 // pred_check
      _
    $region31: #{tpu_custom_call.1} parent=1 // pred_check_branch
      %73 = sbr.rel (0) target = $region33
    $region32: #{tpu_custom_call.1} parent=1 // pred_region
      %s75 = ssub.s32 4096, 4096
      %76 = vsyncadd [#allocation9], %s75
      %s77 = sshll.u32 [#allocation10], 4
      %s78 = int_to_ptr.vmem [resolvable:$true] %s77
      %83 = dma.hbm_to_vmem [thread:$0]  %s7, 4096, %s78, [#allocation9], 64, 64, 4
    $region33: #{tpu_custom_call.1} parent=1 // pred_fallthru
      _
    // Predicated region
    $region34: #{tpu_custom_call.1} parent=1 // pred_check
      _
    $region35: #{tpu_custom_call.1} parent=1 // pred_check_branch
      %85 = sbr.rel (0) target = $region37
    $region36: #{tpu_custom_call.1} parent=1 // pred_region
      _
    $region37: #{tpu_custom_call.1} parent=1 // pred_fallthru
      _
    // Predicated region
    $region38: #{tpu_custom_call.1} parent=1 // pred_check
      _
    $region39: #{tpu_custom_call.1} parent=1 // pred_check_branch
      %87 = sbr.rel (0) target = $region41
    $region40: #{tpu_custom_call.1} parent=1 // pred_region
      %88 = dma.done [#allocation3], 128
    $region41: #{tpu_custom_call.1} parent=1 // pred_fallthru
      _
    // Predicated region
    $region42: #{tpu_custom_call.1} parent=1 // pred_check
      _
    $region43: #{tpu_custom_call.1} parent=1 // pred_check_branch
      %90 = sbr.rel (0) target = $region45
    $region44: #{tpu_custom_call.1} parent=1 // pred_region
      %91 = dma.done [#allocation6], 512
    $region45: #{tpu_custom_call.1} parent=1 // pred_fallthru
      _
    // Predicated region
    $region46: #{tpu_custom_call.1} parent=1 // pred_check
      _
    $region47: #{tpu_custom_call.1} parent=1 // pred_check_branch
      %93 = sbr.rel (0) target = $region49
    $region48: #{tpu_custom_call.1} parent=1 // pred_region
      %94 = dma.done [#allocation6], 2048
    $region49: #{tpu_custom_call.1} parent=1 // pred_fallthru
      _
    // Predicated region
    $region50: #{tpu_custom_call.1} parent=1 // pred_check
      _
    $region51: #{tpu_custom_call.1} parent=1 // pred_check_branch
      %96 = sbr.rel (0) target = $region53
    $region52: #{tpu_custom_call.1} parent=1 // pred_region
      %97 = dma.done [#allocation9], 8192
    $region53: #{tpu_custom_call.1} parent=1 // pred_fallthru
      _
    // Predicated region
    $region54: #{tpu_custom_call.1} parent=1 // pred_check
      _
    $region55: #{tpu_custom_call.1} parent=1 // pred_check_branch
      %99 = sbr.rel (0) target = $region57
    $region56: #{tpu_custom_call.1} parent=1 // pred_region
      %100 = dma.done [#allocation9], 4096
    $region57: #{tpu_custom_call.1} parent=1 // pred_fallthru
      _
    %v102 = vld [vmem:[#allocation2] sm:$0xf]
    %v103 = vld [vmem:[#allocation2 + $0x4] sm:$0xf]
    %v104 = vld [vmem:[#allocation5] sm:$0xf]
    %v105 = vld [vmem:[#allocation5 + $0x4] sm:$0xf]
    %v106 = vld [vmem:[#allocation5 + $0x8] sm:$0xf]
    %v107 = vld [vmem:[#allocation5 + $0xc] sm:$0xf]
    %v108 = vld [vmem:[#allocation5 + $0x10] sm:$0xf]
    %v109 = vld [vmem:[#allocation5 + $0x14] sm:$0xf]
    %v110 = vld [vmem:[#allocation5 + $0x18] sm:$0xf]
    %v111 = vld [vmem:[#allocation5 + $0x1c] sm:$0xf]
    %v112 = vld [vmem:[%s2] sm:$0x1]
    %v114 = vlaneseq
    %v115 = vshrl.u32 %v114, 7
    %v116 = vsub.s32 0, %v115
    %v117 = vrot.slane %v112, %v116
    %v121 = vunpack.c.l.b16 %v102
    %v122 = vunpack.c.l.b16 %v103
    %v123 = vpack.c.b16 %v122, %v121
    %v132 = vunpack.c.l.b16 %v104
    %v133 = vunpack.c.l.b16 %v105
    %v134 = vunpack.c.l.b16 %v106
    %v135 = vunpack.c.l.b16 %v107
    %v136 = vunpack.c.l.b16 %v108
    %v137 = vunpack.c.l.b16 %v109
    %v138 = vunpack.c.l.b16 %v110
    %v139 = vunpack.c.l.b16 %v111
    %v140 = vpack.c.b16 %v133, %v132
    %v141 = vpack.c.b16 %v135, %v134
    %v142 = vpack.c.b16 %v137, %v136
    %v143 = vpack.c.b16 %v139, %v138
    %vm148 = vcmask 523264
    %v150 = vsel %vm148, %v123, 0
    %152 = vmatprep.subr.bf16.mxu0 0
    %153 = vmatpush1.bf16.msra.mxu0 0
    %154 = vmatprep.subr.bf16.mxu0 0
    %155 = vmatpush1.bf16.msra.mxu0 0
    %156 = vmatprep.subr.bf16.mxu0 0
    %157 = vmatpush1.bf16.msra.mxu0 0
    %158 = vmatprep.subr.bf16.mxu0 0
    %159 = vmatpush1.bf16.msra.mxu0 0
    %160 = vmatprep.subr.bf16.mxu0 0
    %161 = vmatpush1.bf16.msra.mxu0 %v143
    %162 = vmatprep.subr.bf16.mxu0 0
    %163 = vmatpush1.bf16.msra.mxu0 %v142
    %164 = vmatprep.subr.bf16.mxu0 0
    %165 = vmatpush1.bf16.msra.mxu0 %v141
    %166 = vmatprep.subr.bf16.mxu0 0
    %167 = vmatpush1.bf16.msra.mxu0 %v140
    %168 = vmatprep.subr.bf16.mxu0 0
    %169 = vmatpush2.bf16.msra.mxu0 0
    %170 = vmatprep.subr.bf16.mxu0 0
    %171 = vmatpush2.bf16.msra.mxu0 0
    %172 = vmatprep.subr.bf16.mxu0 0
    %173 = vmatpush2.bf16.msra.mxu0 0
    %174 = vmatprep.subr.bf16.mxu0 0
    %175 = vmatpush2.bf16.msra.mxu0 0
    %176 = vmatprep.subr.bf16.mxu0 0
    %177 = vmatpush2.bf16.msra.mxu0 0
    %178 = vmatprep.subr.bf16.mxu0 0
    %179 = vmatpush2.bf16.msra.mxu0 0
    %180 = vmatprep.subr.bf16.mxu0 0
    %181 = vmatpush2.bf16.msra.mxu0 0
    %182 = vmatprep.subr.bf16.mxu0 0
    %183 = vmatpush2.bf16.msra.mxu0 0
    %184 = vmatprep.mubr.bf16.mxu0 0
    %185 = vmatmul.mubr.bf16.gmra.mxu0 %v150
    %v186 = vpop.f32.mrf.mxu0
    %v187 = vadd.f32 %v117, %v186
    %v188 = vpop.f32.mrf.mxu0
    %v189 = vpop.f32.mrf.mxu0
    %v190 = vadd.f32 %v117, %v189
    %v191 = vpop.f32.mrf.mxu0
    %192 = vdwg.mxu0
    %v193 = vmax.f32 %v187, 0.0
    %v194 = vmax.f32 %v190, 0.0
    %v195 = vpack.c.bf16 %v194, %v193
    %v196 = vld [vmem:[#allocation7] sm:$0xff]
    %v197 = vld [vmem:[#allocation7 + $0x8] sm:$0xff]
    %v198 = vld [vmem:[#allocation7 + $0x10] sm:$0xff]
    %v199 = vld [vmem:[#allocation7 + $0x18] sm:$0xff]
    %v200 = vld [vmem:[#allocation7 + $0x20] sm:$0xff]
    %v201 = vld [vmem:[#allocation7 + $0x28] sm:$0xff]
    %v202 = vld [vmem:[#allocation7 + $0x30] sm:$0xff]
    %v203 = vld [vmem:[#allocation7 + $0x38] sm:$0xff]
    %v204 = vld [vmem:[#allocation7 + $0x40] sm:$0xff]
    %v205 = vld [vmem:[#allocation7 + $0x48] sm:$0xff]
    %v206 = vld [vmem:[#allocation7 + $0x50] sm:$0xff]
    %v207 = vld [vmem:[#allocation7 + $0x58] sm:$0xff]
    %v208 = vld [vmem:[#allocation7 + $0x60] sm:$0xff]
    %v209 = vld [vmem:[#allocation7 + $0x68] sm:$0xff]
    %v210 = vld [vmem:[#allocation7 + $0x70] sm:$0xff]
    %v211 = vld [vmem:[#allocation7 + $0x78] sm:$0xff]
    %v212 = vld [vmem:[%s4] sm:$0x3]
    %v214 = vlaneseq
    %v215 = vshrl.u32 %v214, 7
    %v216 = vsub.s32 0, %v215
    %v217 = vrot.slane %v212, %v216
    %v218 = vlaneseq
    %v219 = vshrl.u32 %v218, 7
    %v220 = vsub.s32 1, %v219
    %v221 = vrot.slane %v212, %v220
    %v240 = vunpack.c.l.b16 %v196
    %v241 = vunpack.c.h.b16 %v196
    %v242 = vunpack.c.l.b16 %v197
    %v243 = vunpack.c.h.b16 %v197
    %v244 = vunpack.c.l.b16 %v198
    %v245 = vunpack.c.h.b16 %v198
    %v246 = vunpack.c.l.b16 %v199
    %v247 = vunpack.c.h.b16 %v199
    %v248 = vunpack.c.l.b16 %v200
    %v249 = vunpack.c.h.b16 %v200
    %v250 = vunpack.c.l.b16 %v201
    %v251 = vunpack.c.h.b16 %v201
    %v252 = vunpack.c.l.b16 %v202
    %v253 = vunpack.c.h.b16 %v202
    %v254 = vunpack.c.l.b16 %v203
    %v255 = vunpack.c.h.b16 %v203
    %v256 = vunpack.c.l.b16 %v204
    %v257 = vunpack.c.h.b16 %v204
    %v258 = vunpack.c.l.b16 %v205
    %v259 = vunpack.c.h.b16 %v205
    %v260 = vunpack.c.l.b16 %v206
    %v261 = vunpack.c.h.b16 %v206
    %v262 = vunpack.c.l.b16 %v207
    %v263 = vunpack.c.h.b16 %v207
    %v264 = vunpack.c.l.b16 %v208
    %v265 = vunpack.c.h.b16 %v208
    %v266 = vunpack.c.l.b16 %v209
    %v267 = vunpack.c.h.b16 %v209
    %v268 = vunpack.c.l.b16 %v210
    %v269 = vunpack.c.h.b16 %v210
    %v270 = vunpack.c.l.b16 %v211
    %v271 = vunpack.c.h.b16 %v211
    %v272 = vpack.c.b16 %v242, %v240
    %v273 = vpack.c.b16 %v243, %v241
    %v274 = vpack.c.b16 %v246, %v244
    %v275 = vpack.c.b16 %v247, %v245
    %v276 = vpack.c.b16 %v250, %v248
    %v277 = vpack.c.b16 %v251, %v249
    %v278 = vpack.c.b16 %v254, %v252
    %v279 = vpack.c.b16 %v255, %v253
    %v280 = vpack.c.b16 %v258, %v256
    %v281 = vpack.c.b16 %v259, %v257
    %v282 = vpack.c.b16 %v262, %v260
    %v283 = vpack.c.b16 %v263, %v261
    %v284 = vpack.c.b16 %v266, %v264
    %v285 = vpack.c.b16 %v267, %v265
    %v286 = vpack.c.b16 %v270, %v268
    %v287 = vpack.c.b16 %v271, %v269
    %304 = vmatprep.subr.bf16.mxu0 %v287
    %305 = vmatpush1.bf16.msra.mxu0 %v286
    %306 = vmatprep.subr.bf16.mxu0 %v285
    %307 = vmatpush1.bf16.msra.mxu0 %v284
    %308 = vmatprep.subr.bf16.mxu0 %v283
    %309 = vmatpush1.bf16.msra.mxu0 %v282
    %310 = vmatprep.subr.bf16.mxu0 %v281
    %311 = vmatpush1.bf16.msra.mxu0 %v280
    %312 = vmatprep.subr.bf16.mxu0 %v279
    %313 = vmatpush1.bf16.msra.mxu0 %v278
    %314 = vmatprep.subr.bf16.mxu0 %v277
    %315 = vmatpush1.bf16.msra.mxu0 %v276
    %316 = vmatprep.subr.bf16.mxu0 %v275
    %317 = vmatpush1.bf16.msra.mxu0 %v274
    %318 = vmatprep.subr.bf16.mxu0 %v273
    %319 = vmatpush1.bf16.msra.mxu0 %v272
    %320 = vmatprep.subr.bf16.mxu0 0
    %321 = vmatpush2.bf16.msra.mxu0 0
    %322 = vmatprep.subr.bf16.mxu0 0
    %323 = vmatpush2.bf16.msra.mxu0 0
    %324 = vmatprep.subr.bf16.mxu0 0
    %325 = vmatpush2.bf16.msra.mxu0 0
    %326 = vmatprep.subr.bf16.mxu0 0
    %327 = vmatpush2.bf16.msra.mxu0 0
    %328 = vmatprep.subr.bf16.mxu0 0
    %329 = vmatpush2.bf16.msra.mxu0 0
    %330 = vmatprep.subr.bf16.mxu0 0
    %331 = vmatpush2.bf16.msra.mxu0 0
    %332 = vmatprep.subr.bf16.mxu0 0
    %333 = vmatpush2.bf16.msra.mxu0 0
    %334 = vmatprep.subr.bf16.mxu0 0
    %335 = vmatpush2.bf16.msra.mxu0 0
    %336 = vmatprep.mubr.bf16.mxu0 0
    %337 = vmatmul.mubr.bf16.gmra.mxu0 %v195
    %v338 = vpop.f32.mrf.mxu0
    %v339 = vadd.f32 %v217, %v338
    %v340 = vpop.f32.mrf.mxu0
    %v341 = vadd.f32 %v221, %v340
    %v342 = vpop.f32.mrf.mxu0
    %v343 = vadd.f32 %v217, %v342
    %v344 = vpop.f32.mrf.mxu0
    %v345 = vadd.f32 %v221, %v344
    %346 = vdwg.mxu0
    %v347 = vpack.c.bf16 %v343, %v339
    %v348 = vpack.c.bf16 %v345, %v341
    %v349 = vld [vmem:[#allocation8] sm:$0xff]
    %v350 = vld [vmem:[#allocation8 + $0x8] sm:$0xff]
    %v351 = vld [vmem:[#allocation8 + $0x10] sm:$0xff]
    %v352 = vld [vmem:[#allocation8 + $0x18] sm:$0xff]
    %v353 = vld [vmem:[#allocation8 + $0x20] sm:$0xff]
    %v354 = vld [vmem:[#allocation8 + $0x28] sm:$0xff]
    %v355 = vld [vmem:[#allocation8 + $0x30] sm:$0xff]
    %v356 = vld [vmem:[#allocation8 + $0x38] sm:$0xff]
    %v357 = vld [vmem:[#allocation8 + $0x40] sm:$0xff]
    %v358 = vld [vmem:[#allocation8 + $0x48] sm:$0xff]
    %v359 = vld [vmem:[#allocation8 + $0x50] sm:$0xff]
    %v360 = vld [vmem:[#allocation8 + $0x58] sm:$0xff]
    %v361 = vld [vmem:[#allocation8 + $0x60] sm:$0xff]
    %v362 = vld [vmem:[#allocation8 + $0x68] sm:$0xff]
    %v363 = vld [vmem:[#allocation8 + $0x70] sm:$0xff]
    %v364 = vld [vmem:[#allocation8 + $0x78] sm:$0xff]
    %v365 = vld [vmem:[#allocation8 + $0x80] sm:$0xff]
    %v366 = vld [vmem:[#allocation8 + $0x88] sm:$0xff]
    %v367 = vld [vmem:[#allocation8 + $0x90] sm:$0xff]
    %v368 = vld [vmem:[#allocation8 + $0x98] sm:$0xff]
    %v369 = vld [vmem:[#allocation8 + $0xa0] sm:$0xff]
    %v370 = vld [vmem:[#allocation8 + $0xa8] sm:$0xff]
    %v371 = vld [vmem:[#allocation8 + $0xb0] sm:$0xff]
    %v372 = vld [vmem:[#allocation8 + $0xb8] sm:$0xff]
    %v373 = vld [vmem:[#allocation8 + $0xc0] sm:$0xff]
    %v374 = vld [vmem:[#allocation8 + $0xc8] sm:$0xff]
    %v375 = vld [vmem:[#allocation8 + $0xd0] sm:$0xff]
    %v376 = vld [vmem:[#allocation8 + $0xd8] sm:$0xff]
    %v377 = vld [vmem:[#allocation8 + $0xe0] sm:$0xff]
    %v378 = vld [vmem:[#allocation8 + $0xe8] sm:$0xff]
    %v379 = vld [vmem:[#allocation8 + $0xf0] sm:$0xff]
    %v380 = vld [vmem:[#allocation8 + $0xf8] sm:$0xff]
    %v381 = vld [vmem:[#allocation8 + $0x100] sm:$0xff]
    %v382 = vld [vmem:[#allocation8 + $0x108] sm:$0xff]
    %v383 = vld [vmem:[#allocation8 + $0x110] sm:$0xff]
    %v384 = vld [vmem:[#allocation8 + $0x118] sm:$0xff]
    %v385 = vld [vmem:[#allocation8 + $0x120] sm:$0xff]
    %v386 = vld [vmem:[#allocation8 + $0x128] sm:$0xff]
    %v387 = vld [vmem:[#allocation8 + $0x130] sm:$0xff]
    %v388 = vld [vmem:[#allocation8 + $0x138] sm:$0xff]
    %v389 = vld [vmem:[#allocation8 + $0x140] sm:$0xff]
    %v390 = vld [vmem:[#allocation8 + $0x148] sm:$0xff]
    %v391 = vld [vmem:[#allocation8 + $0x150] sm:$0xff]
    %v392 = vld [vmem:[#allocation8 + $0x158] sm:$0xff]
    %v393 = vld [vmem:[#allocation8 + $0x160] sm:$0xff]
    %v394 = vld [vmem:[#allocation8 + $0x168] sm:$0xff]
    %v395 = vld [vmem:[#allocation8 + $0x170] sm:$0xff]
    %v396 = vld [vmem:[#allocation8 + $0x178] sm:$0xff]
    %v397 = vld [vmem:[#allocation8 + $0x180] sm:$0xff]
    %v398 = vld [vmem:[#allocation8 + $0x188] sm:$0xff]
    %v399 = vld [vmem:[#allocation8 + $0x190] sm:$0xff]
    %v400 = vld [vmem:[#allocation8 + $0x198] sm:$0xff]
    %v401 = vld [vmem:[#allocation8 + $0x1a0] sm:$0xff]
    %v402 = vld [vmem:[#allocation8 + $0x1a8] sm:$0xff]
    %v403 = vld [vmem:[#allocation8 + $0x1b0] sm:$0xff]
    %v404 = vld [vmem:[#allocation8 + $0x1b8] sm:$0xff]
    %v405 = vld [vmem:[#allocation8 + $0x1c0] sm:$0xff]
    %v406 = vld [vmem:[#allocation8 + $0x1c8] sm:$0xff]
    %v407 = vld [vmem:[#allocation8 + $0x1d0] sm:$0xff]
    %v408 = vld [vmem:[#allocation8 + $0x1d8] sm:$0xff]
    %v409 = vld [vmem:[#allocation8 + $0x1e0] sm:$0xff]
    %v410 = vld [vmem:[#allocation8 + $0x1e8] sm:$0xff]
    %v411 = vld [vmem:[#allocation8 + $0x1f0] sm:$0xff]
    %v412 = vld [vmem:[#allocation8 + $0x1f8] sm:$0xff]
    %v413 = vld [vmem:[%s6] sm:$0xf]
    %v415 = vlaneseq
    %v416 = vshrl.u32 %v415, 7
    %v417 = vsub.s32 0, %v416
    %v418 = vrot.slane %v413, %v417
    %v419 = vlaneseq
    %v420 = vshrl.u32 %v419, 7
    %v421 = vsub.s32 1, %v420
    %v422 = vrot.slane %v413, %v421
    %v423 = vlaneseq
    %v424 = vshrl.u32 %v423, 7
    %v425 = vsub.s32 2, %v424
    %v426 = vrot.slane %v413, %v425
    %v427 = vlaneseq
    %v428 = vshrl.u32 %v427, 7
    %v429 = vsub.s32 3, %v428
    %v430 = vrot.slane %v413, %v429
    %v499 = vunpack.c.l.b16 %v349
    %v500 = vunpack.c.h.b16 %v349
    %v501 = vunpack.c.l.b16 %v350
    %v502 = vunpack.c.h.b16 %v350
    %v503 = vunpack.c.l.b16 %v351
    %v504 = vunpack.c.h.b16 %v351
    %v505 = vunpack.c.l.b16 %v352
    %v506 = vunpack.c.h.b16 %v352
    %v507 = vunpack.c.l.b16 %v353
    %v508 = vunpack.c.h.b16 %v353
    %v509 = vunpack.c.l.b16 %v354
    %v510 = vunpack.c.h.b16 %v354
    %v511 = vunpack.c.l.b16 %v355
    %v512 = vunpack.c.h.b16 %v355
    %v513 = vunpack.c.l.b16 %v356
    %v514 = vunpack.c.h.b16 %v356
    %v515 = vunpack.c.l.b16 %v357
    %v516 = vunpack.c.h.b16 %v357
    %v517 = vunpack.c.l.b16 %v358
    %v518 = vunpack.c.h.b16 %v358
    %v519 = vunpack.c.l.b16 %v359
    %v520 = vunpack.c.h.b16 %v359
    %v521 = vunpack.c.l.b16 %v360
    %v522 = vunpack.c.h.b16 %v360
    %v523 = vunpack.c.l.b16 %v361
    %v524 = vunpack.c.h.b16 %v361
    %v525 = vunpack.c.l.b16 %v362
    %v526 = vunpack.c.h.b16 %v362
    %v527 = vunpack.c.l.b16 %v363
    %v528 = vunpack.c.h.b16 %v363
    %v529 = vunpack.c.l.b16 %v364
    %v530 = vunpack.c.h.b16 %v364
    %v531 = vunpack.c.l.b16 %v365
    %v532 = vunpack.c.h.b16 %v365
    %v533 = vunpack.c.l.b16 %v366
    %v534 = vunpack.c.h.b16 %v366
    %v535 = vunpack.c.l.b16 %v367
    %v536 = vunpack.c.h.b16 %v367
    %v537 = vunpack.c.l.b16 %v368
    %v538 = vunpack.c.h.b16 %v368
    %v539 = vunpack.c.l.b16 %v369
    %v540 = vunpack.c.h.b16 %v369
    %v541 = vunpack.c.l.b16 %v370
    %v542 = vunpack.c.h.b16 %v370
    %v543 = vunpack.c.l.b16 %v371
    %v544 = vunpack.c.h.b16 %v371
    %v545 = vunpack.c.l.b16 %v372
    %v546 = vunpack.c.h.b16 %v372
    %v547 = vunpack.c.l.b16 %v373
    %v548 = vunpack.c.h.b16 %v373
    %v549 = vunpack.c.l.b16 %v374
    %v550 = vunpack.c.h.b16 %v374
    %v551 = vunpack.c.l.b16 %v375
    %v552 = vunpack.c.h.b16 %v375
    %v553 = vunpack.c.l.b16 %v376
    %v554 = vunpack.c.h.b16 %v376
    %v555 = vunpack.c.l.b16 %v377
    %v556 = vunpack.c.h.b16 %v377
    %v557 = vunpack.c.l.b16 %v378
    %v558 = vunpack.c.h.b16 %v378
    %v559 = vunpack.c.l.b16 %v379
    %v560 = vunpack.c.h.b16 %v379
    %v561 = vunpack.c.l.b16 %v380
    %v562 = vunpack.c.h.b16 %v380
    %v563 = vunpack.c.l.b16 %v381
    %v564 = vunpack.c.h.b16 %v381
    %v565 = vunpack.c.l.b16 %v382
    %v566 = vunpack.c.h.b16 %v382
    %v567 = vunpack.c.l.b16 %v383
    %v568 = vunpack.c.h.b16 %v383
    %v569 = vunpack.c.l.b16 %v384
    %v570 = vunpack.c.h.b16 %v384
    %v571 = vunpack.c.l.b16 %v385
    %v572 = vunpack.c.h.b16 %v385
    %v573 = vunpack.c.l.b16 %v386
    %v574 = vunpack.c.h.b16 %v386
    %v575 = vunpack.c.l.b16 %v387
    %v576 = vunpack.c.h.b16 %v387
    %v577 = vunpack.c.l.b16 %v388
    %v578 = vunpack.c.h.b16 %v388
    %v579 = vunpack.c.l.b16 %v389
    %v580 = vunpack.c.h.b16 %v389
    %v581 = vunpack.c.l.b16 %v390
    %v582 = vunpack.c.h.b16 %v390
    %v583 = vunpack.c.l.b16 %v391
    %v584 = vunpack.c.h.b16 %v391
    %v585 = vunpack.c.l.b16 %v392
    %v586 = vunpack.c.h.b16 %v392
    %v587 = vunpack.c.l.b16 %v393
    %v588 = vunpack.c.h.b16 %v393
    %v589 = vunpack.c.l.b16 %v394
    %v590 = vunpack.c.h.b16 %v394
    %v591 = vunpack.c.l.b16 %v395
    %v592 = vunpack.c.h.b16 %v395
    %v593 = vunpack.c.l.b16 %v396
    %v594 = vunpack.c.h.b16 %v396
    %v595 = vunpack.c.l.b16 %v397
    %v596 = vunpack.c.h.b16 %v397
    %v597 = vunpack.c.l.b16 %v398
    %v598 = vunpack.c.h.b16 %v398
    %v599 = vunpack.c.l.b16 %v399
    %v600 = vunpack.c.h.b16 %v399
    %v601 = vunpack.c.l.b16 %v400
    %v602 = vunpack.c.h.b16 %v400
    %v603 = vunpack.c.l.b16 %v401
    %v604 = vunpack.c.h.b16 %v401
    %v605 = vunpack.c.l.b16 %v402
    %v606 = vunpack.c.h.b16 %v402
    %v607 = vunpack.c.l.b16 %v403
    %v608 = vunpack.c.h.b16 %v403
    %v609 = vunpack.c.l.b16 %v404
    %v610 = vunpack.c.h.b16 %v404
    %v611 = vunpack.c.l.b16 %v405
    %v612 = vunpack.c.h.b16 %v405
    %v613 = vunpack.c.l.b16 %v406
    %v614 = vunpack.c.h.b16 %v406
    %v615 = vunpack.c.l.b16 %v407
    %v616 = vunpack.c.h.b16 %v407
    %v617 = vunpack.c.l.b16 %v408
    %v618 = vunpack.c.h.b16 %v408
    %v619 = vunpack.c.l.b16 %v409
    %v620 = vunpack.c.h.b16 %v409
    %v621 = vunpack.c.l.b16 %v410
    %v622 = vunpack.c.h.b16 %v410
    %v623 = vunpack.c.l.b16 %v411
    %v624 = vunpack.c.h.b16 %v411
    %v625 = vunpack.c.l.b16 %v412
    %v626 = vunpack.c.h.b16 %v412
    %v627 = vpack.c.b16 %v503, %v499
    %v628 = vpack.c.b16 %v504, %v500
    %v629 = vpack.c.b16 %v505, %v501
    %v630 = vpack.c.b16 %v506, %v502
    %v631 = vpack.c.b16 %v511, %v507
    %v632 = vpack.c.b16 %v512, %v508
    %v633 = vpack.c.b16 %v513, %v509
    %v634 = vpack.c.b16 %v514, %v510
    %v635 = vpack.c.b16 %v519, %v515
    %v636 = vpack.c.b16 %v520, %v516
    %v637 = vpack.c.b16 %v521, %v517
    %v638 = vpack.c.b16 %v522, %v518
    %v639 = vpack.c.b16 %v527, %v523
    %v640 = vpack.c.b16 %v528, %v524
    %v641 = vpack.c.b16 %v529, %v525
    %v642 = vpack.c.b16 %v530, %v526
    %v643 = vpack.c.b16 %v535, %v531
    %v644 = vpack.c.b16 %v536, %v532
    %v645 = vpack.c.b16 %v537, %v533
    %v646 = vpack.c.b16 %v538, %v534
    %v647 = vpack.c.b16 %v543, %v539
    %v648 = vpack.c.b16 %v544, %v540
    %v649 = vpack.c.b16 %v545, %v541
    %v650 = vpack.c.b16 %v546, %v542
    %v651 = vpack.c.b16 %v551, %v547
    %v652 = vpack.c.b16 %v552, %v548
    %v653 = vpack.c.b16 %v553, %v549
    %v654 = vpack.c.b16 %v554, %v550
    %v655 = vpack.c.b16 %v559, %v555
    %v656 = vpack.c.b16 %v560, %v556
    %v657 = vpack.c.b16 %v561, %v557
    %v658 = vpack.c.b16 %v562, %v558
    %v659 = vpack.c.b16 %v567, %v563
    %v660 = vpack.c.b16 %v568, %v564
    %v661 = vpack.c.b16 %v569, %v565
    %v662 = vpack.c.b16 %v570, %v566
    %v663 = vpack.c.b16 %v575, %v571
    %v664 = vpack.c.b16 %v576, %v572
    %v665 = vpack.c.b16 %v577, %v573
    %v666 = vpack.c.b16 %v578, %v574
    %v667 = vpack.c.b16 %v583, %v579
    %v668 = vpack.c.b16 %v584, %v580
    %v669 = vpack.c.b16 %v585, %v581
    %v670 = vpack.c.b16 %v586, %v582
    %v671 = vpack.c.b16 %v591, %v587
    %v672 = vpack.c.b16 %v592, %v588
    %v673 = vpack.c.b16 %v593, %v589
    %v674 = vpack.c.b16 %v594, %v590
    %v675 = vpack.c.b16 %v599, %v595
    %v676 = vpack.c.b16 %v600, %v596
    %v677 = vpack.c.b16 %v601, %v597
    %v678 = vpack.c.b16 %v602, %v598
    %v679 = vpack.c.b16 %v607, %v603
    %v680 = vpack.c.b16 %v608, %v604
    %v681 = vpack.c.b16 %v609, %v605
    %v682 = vpack.c.b16 %v610, %v606
    %v683 = vpack.c.b16 %v615, %v611
    %v684 = vpack.c.b16 %v616, %v612
    %v685 = vpack.c.b16 %v617, %v613
    %v686 = vpack.c.b16 %v618, %v614
    %v687 = vpack.c.b16 %v623, %v619
    %v688 = vpack.c.b16 %v624, %v620
    %v689 = vpack.c.b16 %v625, %v621
    %v690 = vpack.c.b16 %v626, %v622
    %755 = vmatprep.subr.bf16.mxu0 %v656
    %756 = vmatpush1.bf16.msra.mxu0 %v655
    %757 = vmatprep.subr.bf16.mxu0 %v652
    %758 = vmatpush1.bf16.msra.mxu0 %v651
    %759 = vmatprep.subr.bf16.mxu0 %v648
    %760 = vmatpush1.bf16.msra.mxu0 %v647
    %761 = vmatprep.subr.bf16.mxu0 %v644
    %762 = vmatpush1.bf16.msra.mxu0 %v643
    %763 = vmatprep.subr.bf16.mxu0 %v640
    %764 = vmatpush1.bf16.msra.mxu0 %v639
    %765 = vmatprep.subr.bf16.mxu0 %v636
    %766 = vmatpush1.bf16.msra.mxu0 %v635
    %767 = vmatprep.subr.bf16.mxu0 %v632
    %768 = vmatpush1.bf16.msra.mxu0 %v631
    %769 = vmatprep.subr.bf16.mxu0 %v628
    %770 = vmatpush1.bf16.msra.mxu0 %v627
    %771 = vmatprep.subr.bf16.mxu0 %v688
    %772 = vmatpush2.bf16.msra.mxu0 %v687
    %773 = vmatprep.subr.bf16.mxu0 %v684
    %774 = vmatpush2.bf16.msra.mxu0 %v683
    %775 = vmatprep.subr.bf16.mxu0 %v680
    %776 = vmatpush2.bf16.msra.mxu0 %v679
    %777 = vmatprep.subr.bf16.mxu0 %v676
    %778 = vmatpush2.bf16.msra.mxu0 %v675
    %779 = vmatprep.subr.bf16.mxu0 %v672
    %780 = vmatpush2.bf16.msra.mxu0 %v671
    %781 = vmatprep.subr.bf16.mxu0 %v668
    %782 = vmatpush2.bf16.msra.mxu0 %v667
    %783 = vmatprep.subr.bf16.mxu0 %v664
    %784 = vmatpush2.bf16.msra.mxu0 %v663
    %785 = vmatprep.subr.bf16.mxu0 %v660
    %786 = vmatpush2.bf16.msra.mxu0 %v659
    %787 = vmatprep.mubr.bf16.mxu0 %v348
    %788 = vmatmul.mubr.bf16.gmra.mxu0 %v347
    %v789 = vpop.f32.mrf.mxu0
    %v790 = vadd.f32 %v418, %v789
    %v791 = vpop.f32.mrf.mxu0
    %v792 = vadd.f32 %v422, %v791
    %v793 = vpop.f32.mrf.mxu0
    %v794 = vadd.f32 %v418, %v793
    %v795 = vpop.f32.mrf.mxu0
    %v796 = vadd.f32 %v422, %v795
    %797 = vdwg.mxu0
    %798 = vmatprep.subr.bf16.mxu0 %v658
    %799 = vmatpush1.bf16.msra.mxu0 %v657
    %800 = vmatprep.subr.bf16.mxu0 %v654
    %801 = vmatpush1.bf16.msra.mxu0 %v653
    %802 = vmatprep.subr.bf16.mxu0 %v650
    %803 = vmatpush1.bf16.msra.mxu0 %v649
    %804 = vmatprep.subr.bf16.mxu0 %v646
    %805 = vmatpush1.bf16.msra.mxu0 %v645
    %806 = vmatprep.subr.bf16.mxu0 %v642
    %807 = vmatpush1.bf16.msra.mxu0 %v641
    %808 = vmatprep.subr.bf16.mxu0 %v638
    %809 = vmatpush1.bf16.msra.mxu0 %v637
    %810 = vmatprep.subr.bf16.mxu0 %v634
    %811 = vmatpush1.bf16.msra.mxu0 %v633
    %812 = vmatprep.subr.bf16.mxu0 %v630
    %813 = vmatpush1.bf16.msra.mxu0 %v629
    %814 = vmatprep.subr.bf16.mxu0 %v690
    %815 = vmatpush2.bf16.msra.mxu0 %v689
    %816 = vmatprep.subr.bf16.mxu0 %v686
    %817 = vmatpush2.bf16.msra.mxu0 %v685
    %818 = vmatprep.subr.bf16.mxu0 %v682
    %819 = vmatpush2.bf16.msra.mxu0 %v681
    %820 = vmatprep.subr.bf16.mxu0 %v678
    %821 = vmatpush2.bf16.msra.mxu0 %v677
    %822 = vmatprep.subr.bf16.mxu0 %v674
    %823 = vmatpush2.bf16.msra.mxu0 %v673
    %824 = vmatprep.subr.bf16.mxu0 %v670
    %825 = vmatpush2.bf16.msra.mxu0 %v669
    %826 = vmatprep.subr.bf16.mxu0 %v666
    %827 = vmatpush2.bf16.msra.mxu0 %v665
    %828 = vmatprep.subr.bf16.mxu0 %v662
    %829 = vmatpush2.bf16.msra.mxu0 %v661
    %830 = vmatprep.mubr.bf16.mxu0 %v348
    %831 = vmatmul.mubr.bf16.gmra.mxu0 %v347
    %v832 = vpop.f32.mrf.mxu0
    %v833 = vadd.f32 %v426, %v832
    %v834 = vpop.f32.mrf.mxu0
    %v835 = vadd.f32 %v430, %v834
    %v836 = vpop.f32.mrf.mxu0
    %v837 = vadd.f32 %v426, %v836
    %v838 = vpop.f32.mrf.mxu0
    %v839 = vadd.f32 %v430, %v838
    %840 = vdwg.mxu0
    %v841 = vmax.f32 %v790, 0.0
    %v842 = vmax.f32 %v792, 0.0
    %v843 = vmax.f32 %v833, 0.0
    %v844 = vmax.f32 %v835, 0.0
    %v845 = vmax.f32 %v794, 0.0
    %v846 = vmax.f32 %v796, 0.0
    %v847 = vmax.f32 %v837, 0.0
    %v848 = vmax.f32 %v839, 0.0
    %v849 = vpack.c.bf16 %v845, %v841
    %v850 = vpack.c.bf16 %v846, %v842
    %v851 = vpack.c.bf16 %v847, %v843
    %v852 = vpack.c.bf16 %v848, %v844
    %v853 = vld [vmem:[#allocation10] sm:$0xf]
    %v854 = vld [vmem:[#allocation10 + $0x4] sm:$0xf]
    %v855 = vld [vmem:[#allocation10 + $0x8] sm:$0xf]
    %v856 = vld [vmem:[#allocation10 + $0xc] sm:$0xf]
    %v857 = vld [vmem:[#allocation10 + $0x10] sm:$0xf]
    %v858 = vld [vmem:[#allocation10 + $0x14] sm:$0xf]
    %v859 = vld [vmem:[#allocation10 + $0x18] sm:$0xf]
    %v860 = vld [vmem:[#allocation10 + $0x1c] sm:$0xf]
    %v861 = vld [vmem:[#allocation10 + $0x20] sm:$0xf]
    %v862 = vld [vmem:[#allocation10 + $0x24] sm:$0xf]
    %v863 = vld [vmem:[#allocation10 + $0x28] sm:$0xf]
    %v864 = vld [vmem:[#allocation10 + $0x2c] sm:$0xf]
    %v865 = vld [vmem:[#allocation10 + $0x30] sm:$0xf]
    %v866 = vld [vmem:[#allocation10 + $0x34] sm:$0xf]
    %v867 = vld [vmem:[#allocation10 + $0x38] sm:$0xf]
    %v868 = vld [vmem:[#allocation10 + $0x3c] sm:$0xf]
    %v869 = vld [vmem:[#allocation10 + $0x40] sm:$0xf]
    %v870 = vld [vmem:[#allocation10 + $0x44] sm:$0xf]
    %v871 = vld [vmem:[#allocation10 + $0x48] sm:$0xf]
    %v872 = vld [vmem:[#allocation10 + $0x4c] sm:$0xf]
    %v873 = vld [vmem:[#allocation10 + $0x50] sm:$0xf]
    %v874 = vld [vmem:[#allocation10 + $0x54] sm:$0xf]
    %v875 = vld [vmem:[#allocation10 + $0x58] sm:$0xf]
    %v876 = vld [vmem:[#allocation10 + $0x5c] sm:$0xf]
    %v877 = vld [vmem:[#allocation10 + $0x60] sm:$0xf]
    %v878 = vld [vmem:[#allocation10 + $0x64] sm:$0xf]
    %v879 = vld [vmem:[#allocation10 + $0x68] sm:$0xf]
    %v880 = vld [vmem:[#allocation10 + $0x6c] sm:$0xf]
    %v881 = vld [vmem:[#allocation10 + $0x70] sm:$0xf]
    %v882 = vld [vmem:[#allocation10 + $0x74] sm:$0xf]
    %v883 = vld [vmem:[#allocation10 + $0x78] sm:$0xf]
    %v884 = vld [vmem:[#allocation10 + $0x7c] sm:$0xf]
    %v885 = vld [vmem:[#allocation10 + $0x80] sm:$0xf]
    %v886 = vld [vmem:[#allocation10 + $0x84] sm:$0xf]
    %v887 = vld [vmem:[#allocation10 + $0x88] sm:$0xf]
    %v888 = vld [vmem:[#allocation10 + $0x8c] sm:$0xf]
    %v889 = vld [vmem:[#allocation10 + $0x90] sm:$0xf]
    %v890 = vld [vmem:[#allocation10 + $0x94] sm:$0xf]
    %v891 = vld [vmem:[#allocation10 + $0x98] sm:$0xf]
    %v892 = vld [vmem:[#allocation10 + $0x9c] sm:$0xf]
    %v893 = vld [vmem:[#allocation10 + $0xa0] sm:$0xf]
    %v894 = vld [vmem:[#allocation10 + $0xa4] sm:$0xf]
    %v895 = vld [vmem:[#allocation10 + $0xa8] sm:$0xf]
    %v896 = vld [vmem:[#allocation10 + $0xac] sm:$0xf]
    %v897 = vld [vmem:[#allocation10 + $0xb0] sm:$0xf]
    %v898 = vld [vmem:[#allocation10 + $0xb4] sm:$0xf]
    %v899 = vld [vmem:[#allocation10 + $0xb8] sm:$0xf]
    %v900 = vld [vmem:[#allocation10 + $0xbc] sm:$0xf]
    %v901 = vld [vmem:[#allocation10 + $0xc0] sm:$0xf]
    %v902 = vld [vmem:[#allocation10 + $0xc4] sm:$0xf]
    %v903 = vld [vmem:[#allocation10 + $0xc8] sm:$0xf]
    %v904 = vld [vmem:[#allocation10 + $0xcc] sm:$0xf]
    %v905 = vld [vmem:[#allocation10 + $0xd0] sm:$0xf]
    %v906 = vld [vmem:[#allocation10 + $0xd4] sm:$0xf]
    %v907 = vld [vmem:[#allocation10 + $0xd8] sm:$0xf]
    %v908 = vld [vmem:[#allocation10 + $0xdc] sm:$0xf]
    %v909 = vld [vmem:[#allocation10 + $0xe0] sm:$0xf]
    %v910 = vld [vmem:[#allocation10 + $0xe4] sm:$0xf]
    %v911 = vld [vmem:[#allocation10 + $0xe8] sm:$0xf]
    %v912 = vld [vmem:[#allocation10 + $0xec] sm:$0xf]
    %v913 = vld [vmem:[#allocation10 + $0xf0] sm:$0xf]
    %v914 = vld [vmem:[#allocation10 + $0xf4] sm:$0xf]
    %v915 = vld [vmem:[#allocation10 + $0xf8] sm:$0xf]
    %v916 = vld [vmem:[#allocation10 + $0xfc] sm:$0xf]
    %v917 = vld [vmem:[%s8] sm:$0x1]
    %v919 = vlaneseq
    %v920 = vshrl.u32 %v919, 7
    %v921 = vsub.s32 0, %v920
    %v922 = vrot.slane %v917, %v921
    %v988 = vunpack.c.l.b16 %v853
    %v989 = vunpack.c.l.b16 %v854
    %v990 = vunpack.c.l.b16 %v855
    %v991 = vunpack.c.l.b16 %v856
    %v992 = vunpack.c.l.b16 %v857
    %v993 = vunpack.c.l.b16 %v858
    %v994 = vunpack.c.l.b16 %v859
    %v995 = vunpack.c.l.b16 %v860
    %v996 = vunpack.c.l.b16 %v861
    %v997 = vunpack.c.l.b16 %v862
    %v998 = vunpack.c.l.b16 %v863
    %v999 = vunpack.c.l.b16 %v864
    %v1000 = vunpack.c.l.b16 %v865
    %v1001 = vunpack.c.l.b16 %v866
    %v1002 = vunpack.c.l.b16 %v867
    %v1003 = vunpack.c.l.b16 %v868
    %v1004 = vunpack.c.l.b16 %v869
    %v1005 = vunpack.c.l.b16 %v870
    %v1006 = vunpack.c.l.b16 %v871
    %v1007 = vunpack.c.l.b16 %v872
    %v1008 = vunpack.c.l.b16 %v873
    %v1009 = vunpack.c.l.b16 %v874
    %v1010 = vunpack.c.l.b16 %v875
    %v1011 = vunpack.c.l.b16 %v876
    %v1012 = vunpack.c.l.b16 %v877
    %v1013 = vunpack.c.l.b16 %v878
    %v1014 = vunpack.c.l.b16 %v879
    %v1015 = vunpack.c.l.b16 %v880
    %v1016 = vunpack.c.l.b16 %v881
    %v1017 = vunpack.c.l.b16 %v882
    %v1018 = vunpack.c.l.b16 %v883
    %v1019 = vunpack.c.l.b16 %v884
    %v1020 = vunpack.c.l.b16 %v885
    %v1021 = vunpack.c.l.b16 %v886
    %v1022 = vunpack.c.l.b16 %v887
    %v1023 = vunpack.c.l.b16 %v888
    %v1024 = vunpack.c.l.b16 %v889
    %v1025 = vunpack.c.l.b16 %v890
    %v1026 = vunpack.c.l.b16 %v891
    %v1027 = vunpack.c.l.b16 %v892
    %v1028 = vunpack.c.l.b16 %v893
    %v1029 = vunpack.c.l.b16 %v894
    %v1030 = vunpack.c.l.b16 %v895
    %v1031 = vunpack.c.l.b16 %v896
    %v1032 = vunpack.c.l.b16 %v897
    %v1033 = vunpack.c.l.b16 %v898
    %v1034 = vunpack.c.l.b16 %v899
    %v1035 = vunpack.c.l.b16 %v900
    %v1036 = vunpack.c.l.b16 %v901
    %v1037 = vunpack.c.l.b16 %v902
    %v1038 = vunpack.c.l.b16 %v903
    %v1039 = vunpack.c.l.b16 %v904
    %v1040 = vunpack.c.l.b16 %v905
    %v1041 = vunpack.c.l.b16 %v906
    %v1042 = vunpack.c.l.b16 %v907
    %v1043 = vunpack.c.l.b16 %v908
    %v1044 = vunpack.c.l.b16 %v909
    %v1045 = vunpack.c.l.b16 %v910
    %v1046 = vunpack.c.l.b16 %v911
    %v1047 = vunpack.c.l.b16 %v912
    %v1048 = vunpack.c.l.b16 %v913
    %v1049 = vunpack.c.l.b16 %v914
    %v1050 = vunpack.c.l.b16 %v915
    %v1051 = vunpack.c.l.b16 %v916
    %v1052 = vpack.c.b16 %v989, %v988
    %v1053 = vpack.c.b16 %v991, %v990
    %v1054 = vpack.c.b16 %v993, %v992
    %v1055 = vpack.c.b16 %v995, %v994
    %v1056 = vpack.c.b16 %v997, %v996
    %v1057 = vpack.c.b16 %v999, %v998
    %v1058 = vpack.c.b16 %v1001, %v1000
    %v1059 = vpack.c.b16 %v1003, %v1002
    %v1060 = vpack.c.b16 %v1005, %v1004
    %v1061 = vpack.c.b16 %v1007, %v1006
    %v1062 = vpack.c.b16 %v1009, %v1008
    %v1063 = vpack.c.b16 %v1011, %v1010
    %v1064 = vpack.c.b16 %v1013, %v1012
    %v1065 = vpack.c.b16 %v1015, %v1014
    %v1066 = vpack.c.b16 %v1017, %v1016
    %v1067 = vpack.c.b16 %v1019, %v1018
    %v1068 = vpack.c.b16 %v1021, %v1020
    %v1069 = vpack.c.b16 %v1023, %v1022
    %v1070 = vpack.c.b16 %v1025, %v1024
    %v1071 = vpack.c.b16 %v1027, %v1026
    %v1072 = vpack.c.b16 %v1029, %v1028
    %v1073 = vpack.c.b16 %v1031, %v1030
    %v1074 = vpack.c.b16 %v1033, %v1032
    %v1075 = vpack.c.b16 %v1035, %v1034
    %v1076 = vpack.c.b16 %v1037, %v1036
    %v1077 = vpack.c.b16 %v1039, %v1038
    %v1078 = vpack.c.b16 %v1041, %v1040
    %v1079 = vpack.c.b16 %v1043, %v1042
    %v1080 = vpack.c.b16 %v1045, %v1044
    %v1081 = vpack.c.b16 %v1047, %v1046
    %v1082 = vpack.c.b16 %v1049, %v1048
    %v1083 = vpack.c.b16 %v1051, %v1050
    %1116 = vmatprep.subr.bf16.mxu0 0
    %1117 = vmatpush1.bf16.msra.mxu0 %v1059
    %1118 = vmatprep.subr.bf16.mxu0 0
    %1119 = vmatpush1.bf16.msra.mxu0 %v1058
    %1120 = vmatprep.subr.bf16.mxu0 0
    %1121 = vmatpush1.bf16.msra.mxu0 %v1057
    %1122 = vmatprep.subr.bf16.mxu0 0
    %1123 = vmatpush1.bf16.msra.mxu0 %v1056
    %1124 = vmatprep.subr.bf16.mxu0 0
    %1125 = vmatpush1.bf16.msra.mxu0 %v1055
    %1126 = vmatprep.subr.bf16.mxu0 0
    %1127 = vmatpush1.bf16.msra.mxu0 %v1054
    %1128 = vmatprep.subr.bf16.mxu0 0
    %1129 = vmatpush1.bf16.msra.mxu0 %v1053
    %1130 = vmatprep.subr.bf16.mxu0 0
    %1131 = vmatpush1.bf16.msra.mxu0 %v1052
    %1132 = vmatprep.subr.bf16.mxu0 0
    %1133 = vmatpush2.bf16.msra.mxu0 %v1067
    %1134 = vmatprep.subr.bf16.mxu0 0
    %1135 = vmatpush2.bf16.msra.mxu0 %v1066
    %1136 = vmatprep.subr.bf16.mxu0 0
    %1137 = vmatpush2.bf16.msra.mxu0 %v1065
    %1138 = vmatprep.subr.bf16.mxu0 0
    %1139 = vmatpush2.bf16.msra.mxu0 %v1064
    %1140 = vmatprep.subr.bf16.mxu0 0
    %1141 = vmatpush2.bf16.msra.mxu0 %v1063
    %1142 = vmatprep.subr.bf16.mxu0 0
    %1143 = vmatpush2.bf16.msra.mxu0 %v1062
    %1144 = vmatprep.subr.bf16.mxu0 0
    %1145 = vmatpush2.bf16.msra.mxu0 %v1061
    %1146 = vmatprep.subr.bf16.mxu0 0
    %1147 = vmatpush2.bf16.msra.mxu0 %v1060
    %1148 = vmatprep.mubr.bf16.mxu0 %v850
    %1149 = vmatmul.mubr.bf16.gmra.mxu0 %v849
    %v1150 = vpop.f32.mrf.mxu0
    %v1151 = vadd.f32 %v922, %v1150
    %v1152 = vpop.f32.mrf.mxu0
    %v1153 = vpop.f32.mrf.mxu0
    %v1154 = vadd.f32 %v922, %v1153
    %v1155 = vpop.f32.mrf.mxu0
    %1156 = vdwg.mxu0
    %1157 = vmatprep.subr.bf16.mxu0 0
    %1158 = vmatpush1.bf16.msra.mxu0 %v1075
    %1159 = vmatprep.subr.bf16.mxu0 0
    %1160 = vmatpush1.bf16.msra.mxu0 %v1074
    %1161 = vmatprep.subr.bf16.mxu0 0
    %1162 = vmatpush1.bf16.msra.mxu0 %v1073
    %1163 = vmatprep.subr.bf16.mxu0 0
    %1164 = vmatpush1.bf16.msra.mxu0 %v1072
    %1165 = vmatprep.subr.bf16.mxu0 0
    %1166 = vmatpush1.bf16.msra.mxu0 %v1071
    %1167 = vmatprep.subr.bf16.mxu0 0
    %1168 = vmatpush1.bf16.msra.mxu0 %v1070
    %1169 = vmatprep.subr.bf16.mxu0 0
    %1170 = vmatpush1.bf16.msra.mxu0 %v1069
    %1171 = vmatprep.subr.bf16.mxu0 0
    %1172 = vmatpush1.bf16.msra.mxu0 %v1068
    %1173 = vmatprep.subr.bf16.mxu0 0
    %1174 = vmatpush2.bf16.msra.mxu0 %v1083
    %1175 = vmatprep.subr.bf16.mxu0 0
    %1176 = vmatpush2.bf16.msra.mxu0 %v1082
    %1177 = vmatprep.subr.bf16.mxu0 0
    %1178 = vmatpush2.bf16.msra.mxu0 %v1081
    %1179 = vmatprep.subr.bf16.mxu0 0
    %1180 = vmatpush2.bf16.msra.mxu0 %v1080
    %1181 = vmatprep.subr.bf16.mxu0 0
    %1182 = vmatpush2.bf16.msra.mxu0 %v1079
    %1183 = vmatprep.subr.bf16.mxu0 0
    %1184 = vmatpush2.bf16.msra.mxu0 %v1078
    %1185 = vmatprep.subr.bf16.mxu0 0
    %1186 = vmatpush2.bf16.msra.mxu0 %v1077
    %1187 = vmatprep.subr.bf16.mxu0 0
    %1188 = vmatpush2.bf16.msra.mxu0 %v1076
    %1189 = vmatprep.mubr.bf16.mxu0 %v852
    %1190 = vmatmul.mubr.bf16.gmra.mxu0 %v851
    %v1191 = vpop.f32.mrf.mxu0
    %v1192 = vadd.f32 %v1151, %v1191
    %v1193 = vpop.f32.mrf.mxu0
    %v1194 = vpop.f32.mrf.mxu0
    %v1195 = vadd.f32 %v1154, %v1194
    %v1196 = vpop.f32.mrf.mxu0
    %1197 = vdwg.mxu0
    %1198 = vst [vmem:[#allocation11] sm:$0xff] %v1192
    %1199 = vst [vmem:[#allocation11 + $0x8] sm:$0xff] %v1195
    // Predicated region
    $region58: #{tpu_custom_call.1} parent=1 // pred_check
      _
    $region59: #{tpu_custom_call.1} parent=1 // pred_check_branch
      %1201 = sbr.rel (0) target = $region61
    $region60: #{tpu_custom_call.1} parent=1 // pred_region
      %s1203 = ssub.s32 256, 256
      %1204 = vsyncadd [#allocation4], %s1203
      %s1205 = sshll.u32 [#allocation11], 4
      %s1206 = int_to_ptr.vmem [resolvable:$true] %s1205
      %1211 = dma.vmem_to_hbm [thread:$0]  %s1206, 256, %s9, [#allocation4], 128, 128, 8
    $region61: #{tpu_custom_call.1} parent=1 // pred_fallthru
      _
    // Predicated region
    $region62: #{tpu_custom_call.1} parent=1 // pred_check
      _
    $region63: #{tpu_custom_call.1} parent=1 // pred_check_branch
      %1213 = sbr.rel (0) target = $region65
    $region64: #{tpu_custom_call.1} parent=1 // pred_region
      %1214 = dma.done [#allocation4], 256
    $region65: #{tpu_custom_call.1} parent=1 // pred_fallthru
      _
    %1215 = vsyncpa [#allocation3], 1
    %1216 = vsyncpa [#allocation6], 1
    %1217 = vsyncpa [#allocation9], 1
    %1218 = vsyncpa [#allocation4], 1

</llo_original>
